<compile_context>
chip_gen: v7x
topology: tpu7x:2x2x1
jax: 0.10.0
libtpu: 0.0.40
codegen_flags: <defaults>
</compile_context>

<pallas_src>
import functools

import jax
import jax.numpy as jnp
from jax.experimental import pallas as pl
from jax.experimental.pallas import tpu as pltpu

# --- hyperparameters (deterministic stand-ins for optuna `trail.suggest_*`) ---
# TODO(synk): optuna trial sampling has no Pallas equivalent; fixed constants.
NUM_LAYERS = 2        # trail.suggest_int('discriminator_layers', 1, 4)      -> 2
HIDDEN = 32           # trail.suggest_int('discriminator_hidden_size', ...)  -> 32
INPUT_SIZE = 128
NUM_LABELS = 2
LEAKY_SLOPE = 0.2     # `dropout_rate` is (re)used as the LeakyReLU negative slope
VOCAB_SIZE = 50
PADDING_IDX = 0

HPAD = 128            # lane-dense feature width for every activation / weight
VPAD = 128            # vocab size rounded up to a full lane width
NEG = -1e30           # "minus infinity" bias for padded logit lanes


def _round_up(x, m):
    return (x + m - 1) // m * m


def _pad2(x, rows, cols):
    """Zero-pad a 2-D array up to (rows, cols) in f32."""
    x = jnp.asarray(x, jnp.float32)
    return jnp.zeros((rows, cols), jnp.float32).at[: x.shape[0], : x.shape[1]].set(x)


def _discriminator_kernel(counts_ref, emb_ref, *refs):
    """in:  counts (TB, VPAD), emb_table (VPAD, HPAD), [W, b] x (NUM_LAYERS+1)
       out: last_rep (TB, HPAD), logits (TB, HPAD), probs (TB, HPAD)
       All weights/biases are padded to HPAD lanes (logit bias pad = NEG)."""
    n_lin = NUM_LAYERS + 1
    wb = refs[: 2 * n_lin]
    rep_ref, logits_ref, probs_ref = refs[2 * n_lin:]

    counts = counts_ref[...]                                   # (TB, VPAD) f32

    # EmbeddingBag(mode='mean', padding_idx): pooled sum as an MXU matmul,
    # bag length as a lane reduction.  Empty bags -> 0 (matches PyTorch).
    pooled = jnp.dot(counts, emb_ref[...],
                     preferred_element_type=jnp.float32)       # (TB, HPAD)
    cnt = jnp.sum(counts, axis=-1, keepdims=True)              # (TB, 1)
    h = pooled * pl.reciprocal(jnp.maximum(cnt, 1.0), approx=True)

    # MLP: Linear -> LeakyReLU(0.2), NUM_LAYERS times (padded lanes stay 0).
    for i in range(NUM_LAYERS):
        w = wb[2 * i][...]                                     # (HPAD, HPAD)
        b = wb[2 * i + 1][...]                                 # (1, HPAD)
        h = jnp.dot(h, w, preferred_element_type=jnp.float32) + b
        h = jnp.where(h >= 0.0, h, LEAKY_SLOPE * h)
    rep_ref[...] = h

    # Logit projection (padded lanes get NEG bias) + softmax(dim=-1).
    wl = wb[2 * NUM_LAYERS][...]
    bl = wb[2 * NUM_LAYERS + 1][...]
    logits = jnp.dot(h, wl, preferred_element_type=jnp.float32) + bl
    logits_ref[...] = logits

    m = jnp.max(logits, axis=-1, keepdims=True)
    e = jnp.exp(logits - m)                                    # padded lanes -> 0
    probs_ref[...] = e * pl.reciprocal(jnp.sum(e, axis=-1, keepdims=True),
                                       approx=True)


def discriminator_forward(text, params, *, block_b=256):
    """text: (B, L) int32 token ids.  Returns (last_rep, logits, probs)."""
    B, L = text.shape
    n_out = NUM_LABELS + 1

    # --- glue: per-row token histogram (excludes padding tokens) -------------
    counts = jnp.sum(jax.nn.one_hot(text, VPAD, dtype=jnp.float32), axis=1)
    counts = counts.at[:, PADDING_IDX].set(0.0)                # (B, VPAD)

    # --- batch tiling: TB rows per grid step (sized for 64 MiB v7x VMEM) -----
    TB = block_b if B > block_b else _round_up(max(B, 1), 8)
    B_pad = _round_up(B, TB)
    if B_pad != B:
        counts = jnp.pad(counts, ((0, B_pad - B), (0, 0)))

    # --- lane-dense (zero / NEG padded) parameters ----------------------------
    emb_pad = _pad2(params["embedding"], VPAD, HPAD)
    wb = []
    for i in range(NUM_LAYERS):
        wb.append(_pad2(params[f"w{i}"], HPAD, HPAD))
        wb.append(_pad2(params[f"b{i}"].reshape(1, -1), 1, HPAD))
    wb.append(_pad2(params["w_logit"], HPAD, HPAD))
    wb.append(jnp.full((1, HPAD), NEG, jnp.float32)
              .at[0, :n_out].set(params["b_logit"].astype(jnp.float32)))

    n_blocks = B_pad // TB
    batch_spec = pl.BlockSpec((TB, VPAD), lambda i: (i, 0))
    out_spec = pl.BlockSpec((TB, HPAD), lambda i: (i, 0))

    def resident(shape):                   # weights: constant block, stays in VMEM
        return pl.BlockSpec(shape, lambda i: (0, 0))

    weight_bytes = 4 * (VPAD * HPAD + sum(int(w.size) for w in wb))
    cost = pl.CostEstimate(
        flops=2 * B_pad * HPAD * (VPAD + (NUM_LAYERS + 1) * HPAD),
        transcendentals=B_pad * HPAD,
        bytes_accessed=4 * (B_pad * VPAD + 3 * B_pad * HPAD) + weight_bytes,
    )

    grid_spec = pltpu.PrefetchScalarGridSpec(
        num_scalar_prefetch=0,
        grid=(n_blocks,),
        in_specs=[batch_spec, resident((VPAD, HPAD))]
                + [resident(tuple(w.shape)) for w in wb],
        out_specs=(out_spec, out_spec, out_spec),
    )

    kernel = pl.pallas_call(
        _discriminator_kernel,
        out_shape=tuple(jax.ShapeDtypeStruct((B_pad, HPAD), jnp.float32)
                        for _ in range(3)),
        grid_spec=grid_spec,
        compiler_params=pltpu.CompilerParams(
            dimension_semantics=("parallel",)),   # v7x megacore splits batch blocks
        cost_estimate=cost,
    )
    rep_pad, logits_pad, probs_pad = kernel(counts, emb_pad, *wb)
    return (rep_pad[:B, :HIDDEN],
            logits_pad[:B, :n_out],
            probs_pad[:B, :n_out])


def init_params(key):
    """Deterministic synthetic init matching the PyTorch module's shapes."""
    keys = jax.random.split(key, 2 * (NUM_LAYERS + 1) + 1)
    params = {}
    emb = 0.02 * jax.random.normal(keys[0], (VOCAB_SIZE, INPUT_SIZE), jnp.float32)
    emb = emb.at[PADDING_IDX].set(0.0)          # padding row is all zeros
    params["embedding"] = emb

    sizes = [INPUT_SIZE] + [HIDDEN] * NUM_LAYERS
    for i in range(NUM_LAYERS):
        fan_in, fan_out = sizes[i], sizes[i + 1]
        bound = 1.0 / jnp.sqrt(fan_in)
        params[f"w{i}"] = jax.random.uniform(
            keys[1 + 2 * i], (fan_in, fan_out), jnp.float32, -bound, bound)
        params[f"b{i}"] = jax.random.uniform(
            keys[2 + 2 * i], (fan_out,), jnp.float32, -bound, bound)

    bound = 1.0 / jnp.sqrt(HIDDEN)
    params["w_logit"] = jax.random.uniform(
        keys[-2], (HIDDEN, NUM_LABELS + 1), jnp.float32, -bound, bound)
    params["b_logit"] = jax.random.uniform(
        keys[-1], (NUM_LABELS + 1,), jnp.float32, -bound, bound)
    return params


def reference_forward(text, params):
    """Pure-JAX reference mirroring the PyTorch semantics (for verification)."""
    emb = jnp.take(params["embedding"], text, axis=0)
    mask = (text != PADDING_IDX).astype(jnp.float32)[..., None]
    pooled = jnp.sum(emb * mask, axis=1)
    cnt = jnp.maximum(jnp.sum(mask, axis=1), 1.0)
    h = pooled / cnt
    for i in range(NUM_LAYERS):
        h = h @ params[f"w{i}"] + params[f"b{i}"]
        h = jnp.where(h >= 0.0, h, LEAKY_SLOPE * h)
    logits = h @ params["w_logit"] + params["b_logit"]
    probs = jax.nn.softmax(logits, axis=-1)
    return h, logits, probs


if __name__ == "__main__":
    key = jax.random.PRNGKey(0)
    k_param, k_text = jax.random.split(key)

    params = init_params(k_param)

    B, L = 8, 8
    text = jax.random.randint(k_text, (B, L), 0, VOCAB_SIZE, dtype=jnp.int32)
    # force a few padding tokens so the masked-mean path is exercised
    text = text.at[:, -2:].set(PADDING_IDX)

    fwd = jax.jit(discriminator_forward)
    last_rep, logits, probs = fwd(text, params)
    jax.block_until_ready((last_rep, logits, probs))

    ref_rep, ref_logits, ref_probs = reference_forward(text, params)
    # tolerances accommodate the approximate EUP reciprocals used in-kernel
    assert jnp.allclose(last_rep, ref_rep, atol=1e-3, rtol=1e-3)
    assert jnp.allclose(logits, ref_logits, atol=1e-3, rtol=1e-3)
    assert jnp.allclose(probs, ref_probs, atol=1e-3, rtol=1e-3)

    print("KERNEL_OK")
</pallas_src>

<mosaic_0001>
module attributes {stable_mosaic.version = 11 : i64} {
  func.func @_discriminator_kernel(%arg0: i32, %arg1: memref<8x128xf32, #tpu.memory_space<vmem>>, %arg2: memref<128x128xf32, #tpu.memory_space<vmem>>, %arg3: memref<128x128xf32, #tpu.memory_space<vmem>>, %arg4: memref<1x128xf32, #tpu.memory_space<vmem>>, %arg5: memref<128x128xf32, #tpu.memory_space<vmem>>, %arg6: memref<1x128xf32, #tpu.memory_space<vmem>>, %arg7: memref<128x128xf32, #tpu.memory_space<vmem>>, %arg8: memref<1x128xf32, #tpu.memory_space<vmem>>, %arg9: memref<8x128xf32, #tpu.memory_space<vmem>>, %arg10: memref<8x128xf32, #tpu.memory_space<vmem>>, %arg11: memref<8x128xf32, #tpu.memory_space<vmem>>) attributes {dimension_semantics = [#tpu.dimension_semantics<parallel>], iteration_bounds = array<i64: 1>, scalar_prefetch = 0 : i64, scratch_operands = 0 : i64, tpu.core_type = #tpu.core_type<tc>, window_params = [{transform_indices = @transform_0, window_bounds = array<i64: 8, 128>}, {pipeline_mode = #tpu.pipeline_mode<synchronous>, transform_indices = @transform_1, window_bounds = array<i64: 128, 128>}, {pipeline_mode = #tpu.pipeline_mode<synchronous>, transform_indices = @transform_2, window_bounds = array<i64: 128, 128>}, {pipeline_mode = #tpu.pipeline_mode<synchronous>, transform_indices = @transform_3, window_bounds = array<i64: 1, 128>}, {pipeline_mode = #tpu.pipeline_mode<synchronous>, transform_indices = @transform_4, window_bounds = array<i64: 128, 128>}, {pipeline_mode = #tpu.pipeline_mode<synchronous>, transform_indices = @transform_5, window_bounds = array<i64: 1, 128>}, {pipeline_mode = #tpu.pipeline_mode<synchronous>, transform_indices = @transform_6, window_bounds = array<i64: 128, 128>}, {pipeline_mode = #tpu.pipeline_mode<synchronous>, transform_indices = @transform_7, window_bounds = array<i64: 1, 128>}, {transform_indices = @transform_8, window_bounds = array<i64: 8, 128>}, {transform_indices = @transform_9, window_bounds = array<i64: 8, 128>}, {transform_indices = @transform_10, window_bounds = array<i64: 8, 128>}]} {
    %c0 = arith.constant 0 : index
    %c0_0 = arith.constant 0 : index
    %0 = vector.load %arg1[%c0, %c0_0] : memref<8x128xf32, #tpu.memory_space<vmem>>, vector<8x128xf32>
    %c0_1 = arith.constant 0 : index
    %c0_2 = arith.constant 0 : index
    %1 = vector.load %arg2[%c0_1, %c0_2] : memref<128x128xf32, #tpu.memory_space<vmem>>, vector<128x128xf32>
    %cst = arith.constant dense<0.000000e+00> : vector<8x128xf32>
    %2 = tpu.matmul %0, %1, %cst {dimension_numbers = #tpu.dot_dimension_numbers<[1], [0], [0], [1], [0, 0, 1, 1], [], []>} : vector<8x128xf32>, vector<128x128xf32>, vector<8x128xf32> -> vector<8x128xf32>
    %cst_3 = arith.constant dense<0.000000e+00> : vector<8xf32>
    %3 = vector.multi_reduction <add>, %0, %cst_3 [1] : vector<8x128xf32> to vector<8xf32>
    %4 = vector.shape_cast %3 : vector<8xf32> to vector<8x1xf32>
    %cst_4 = arith.constant 1.000000e+00 : f32
    %5 = vector.broadcast %cst_4 : f32 to vector<8x1xf32>
    %6 = arith.maximumf %4, %5 : vector<8x1xf32>
    %7 = tpu.reciprocal %6 {approx = true} : vector<8x1xf32> -> vector<8x1xf32>
    %8 = vector.broadcast %7 : vector<8x1xf32> to vector<8x128xf32>
    %9 = arith.mulf %2, %8 : vector<8x128xf32>
    %c0_5 = arith.constant 0 : index
    %c0_6 = arith.constant 0 : index
    %10 = vector.load %arg3[%c0_5, %c0_6] : memref<128x128xf32, #tpu.memory_space<vmem>>, vector<128x128xf32>
    %c0_7 = arith.constant 0 : index
    %c0_8 = arith.constant 0 : index
    %11 = vector.load %arg4[%c0_7, %c0_8] : memref<1x128xf32, #tpu.memory_space<vmem>>, vector<1x128xf32>
    %cst_9 = arith.constant dense<0.000000e+00> : vector<8x128xf32>
    %12 = tpu.matmul %9, %10, %cst_9 {dimension_numbers = #tpu.dot_dimension_numbers<[1], [0], [0], [1], [0, 0, 1, 1], [], []>} : vector<8x128xf32>, vector<128x128xf32>, vector<8x128xf32> -> vector<8x128xf32>
    %13 = vector.broadcast %11 : vector<1x128xf32> to vector<8x128xf32>
    %14 = arith.addf %12, %13 : vector<8x128xf32>
    %cst_10 = arith.constant 0.000000e+00 : f32
    %15 = vector.broadcast %cst_10 : f32 to vector<8x128xf32>
    %16 = arith.cmpf oge, %14, %15 : vector<8x128xf32>
    %cst_11 = arith.constant 2.000000e-01 : f32
    %17 = vector.broadcast %cst_11 : f32 to vector<8x128xf32>
    %18 = arith.mulf %17, %14 : vector<8x128xf32>
    %19 = arith.select %16, %14, %18 : vector<8x128xi1>, vector<8x128xf32>
    %c0_12 = arith.constant 0 : index
    %c0_13 = arith.constant 0 : index
    %20 = vector.load %arg5[%c0_12, %c0_13] : memref<128x128xf32, #tpu.memory_space<vmem>>, vector<128x128xf32>
    %c0_14 = arith.constant 0 : index
    %c0_15 = arith.constant 0 : index
    %21 = vector.load %arg6[%c0_14, %c0_15] : memref<1x128xf32, #tpu.memory_space<vmem>>, vector<1x128xf32>
    %cst_16 = arith.constant dense<0.000000e+00> : vector<8x128xf32>
    %22 = tpu.matmul %19, %20, %cst_16 {dimension_numbers = #tpu.dot_dimension_numbers<[1], [0], [0], [1], [0, 0, 1, 1], [], []>} : vector<8x128xf32>, vector<128x128xf32>, vector<8x128xf32> -> vector<8x128xf32>
    %23 = vector.broadcast %21 : vector<1x128xf32> to vector<8x128xf32>
    %24 = arith.addf %22, %23 : vector<8x128xf32>
    %cst_17 = arith.constant 0.000000e+00 : f32
    %25 = vector.broadcast %cst_17 : f32 to vector<8x128xf32>
    %26 = arith.cmpf oge, %24, %25 : vector<8x128xf32>
    %cst_18 = arith.constant 2.000000e-01 : f32
    %27 = vector.broadcast %cst_18 : f32 to vector<8x128xf32>
    %28 = arith.mulf %27, %24 : vector<8x128xf32>
    %29 = arith.select %26, %24, %28 : vector<8x128xi1>, vector<8x128xf32>
    %c0_19 = arith.constant 0 : index
    %c0_20 = arith.constant 0 : index
    %30 = vector.load %arg9[%c0_19, %c0_20] : memref<8x128xf32, #tpu.memory_space<vmem>>, vector<8x128xf32>
    tpu.vector_store %arg9[%c0_19, %c0_20], %29 {strides = array<i32>} : memref<8x128xf32, #tpu.memory_space<vmem>>, vector<8x128xf32>,
    %c0_21 = arith.constant 0 : index
    %c0_22 = arith.constant 0 : index
    %31 = vector.load %arg7[%c0_21, %c0_22] : memref<128x128xf32, #tpu.memory_space<vmem>>, vector<128x128xf32>
    %c0_23 = arith.constant 0 : index
    %c0_24 = arith.constant 0 : index
    %32 = vector.load %arg8[%c0_23, %c0_24] : memref<1x128xf32, #tpu.memory_space<vmem>>, vector<1x128xf32>
    %cst_25 = arith.constant dense<0.000000e+00> : vector<8x128xf32>
    %33 = tpu.matmul %29, %31, %cst_25 {dimension_numbers = #tpu.dot_dimension_numbers<[1], [0], [0], [1], [0, 0, 1, 1], [], []>} : vector<8x128xf32>, vector<128x128xf32>, vector<8x128xf32> -> vector<8x128xf32>
    %34 = vector.broadcast %32 : vector<1x128xf32> to vector<8x128xf32>
    %35 = arith.addf %33, %34 : vector<8x128xf32>
    %c0_26 = arith.constant 0 : index
    %c0_27 = arith.constant 0 : index
    %36 = vector.load %arg10[%c0_26, %c0_27] : memref<8x128xf32, #tpu.memory_space<vmem>>, vector<8x128xf32>
    tpu.vector_store %arg10[%c0_26, %c0_27], %35 {strides = array<i32>} : memref<8x128xf32, #tpu.memory_space<vmem>>, vector<8x128xf32>,
    %cst_28 = arith.constant dense<0xFF800000> : vector<8xf32>
    %37 = vector.multi_reduction <maximumf>, %35, %cst_28 [1] : vector<8x128xf32> to vector<8xf32>
    %38 = vector.shape_cast %37 : vector<8xf32> to vector<8x1xf32>
    %39 = vector.broadcast %38 : vector<8x1xf32> to vector<8x128xf32>
    %40 = arith.subf %35, %39 : vector<8x128xf32>
    %41 = math.exp %40 : vector<8x128xf32>
    %cst_29 = arith.constant dense<0.000000e+00> : vector<8xf32>
    %42 = vector.multi_reduction <add>, %41, %cst_29 [1] : vector<8x128xf32> to vector<8xf32>
    %43 = vector.shape_cast %42 : vector<8xf32> to vector<8x1xf32>
    %44 = tpu.reciprocal %43 {approx = true} : vector<8x1xf32> -> vector<8x1xf32>
    %45 = vector.broadcast %44 : vector<8x1xf32> to vector<8x128xf32>
    %46 = arith.mulf %41, %45 : vector<8x128xf32>
    %c0_30 = arith.constant 0 : index
    %c0_31 = arith.constant 0 : index
    %47 = vector.load %arg11[%c0_30, %c0_31] : memref<8x128xf32, #tpu.memory_space<vmem>>, vector<8x128xf32>
    tpu.vector_store %arg11[%c0_30, %c0_31], %46 {strides = array<i32>} : memref<8x128xf32, #tpu.memory_space<vmem>>, vector<8x128xf32>,
    return
  }
  func.func @transform_0(%arg0: i32) -> (i32, i32) {
    %c0_i32 = arith.constant 0 : i32
    %c0_i32_0 = arith.constant 0 : i32
    return %arg0, %c0_i32 : i32, i32
  }
  func.func @transform_1(%arg0: i32) -> (i32, i32) {
    %c0_i32 = arith.constant 0 : i32
    %c0_i32_0 = arith.constant 0 : i32
    %c0_i32_1 = arith.constant 0 : i32
    return %c0_i32, %c0_i32_0 : i32, i32
  }
  func.func @transform_2(%arg0: i32) -> (i32, i32) {
    %c0_i32 = arith.constant 0 : i32
    %c0_i32_0 = arith.constant 0 : i32
    %c0_i32_1 = arith.constant 0 : i32
    return %c0_i32, %c0_i32_0 : i32, i32
  }
  func.func @transform_3(%arg0: i32) -> (i32, i32) {
    %c0_i32 = arith.constant 0 : i32
    %c0_i32_0 = arith.constant 0 : i32
    %c0_i32_1 = arith.constant 0 : i32
    return %c0_i32, %c0_i32_0 : i32, i32
  }
  func.func @transform_4(%arg0: i32) -> (i32, i32) {
    %c0_i32 = arith.constant 0 : i32
    %c0_i32_0 = arith.constant 0 : i32
    %c0_i32_1 = arith.constant 0 : i32
    return %c0_i32, %c0_i32_0 : i32, i32
  }
  func.func @transform_5(%arg0: i32) -> (i32, i32) {
    %c0_i32 = arith.constant 0 : i32
    %c0_i32_0 = arith.constant 0 : i32
    %c0_i32_1 = arith.constant 0 : i32
    return %c0_i32, %c0_i32_0 : i32, i32
  }
  func.func @transform_6(%arg0: i32) -> (i32, i32) {
    %c0_i32 = arith.constant 0 : i32
    %c0_i32_0 = arith.constant 0 : i32
    %c0_i32_1 = arith.constant 0 : i32
    return %c0_i32, %c0_i32_0 : i32, i32
  }
  func.func @transform_7(%arg0: i32) -> (i32, i32) {
    %c0_i32 = arith.constant 0 : i32
    %c0_i32_0 = arith.constant 0 : i32
    %c0_i32_1 = arith.constant 0 : i32
    return %c0_i32, %c0_i32_0 : i32, i32
  }
  func.func @transform_8(%arg0: i32) -> (i32, i32) {
    %c0_i32 = arith.constant 0 : i32
    %c0_i32_0 = arith.constant 0 : i32
    return %arg0, %c0_i32 : i32, i32
  }
  func.func @transform_9(%arg0: i32) -> (i32, i32) {
    %c0_i32 = arith.constant 0 : i32
    %c0_i32_0 = arith.constant 0 : i32
    return %arg0, %c0_i32 : i32, i32
  }
  func.func @transform_10(%arg0: i32) -> (i32, i32) {
    %c0_i32 = arith.constant 0 : i32
    %c0_i32_0 = arith.constant 0 : i32
    return %arg0, %c0_i32 : i32, i32
  }
}

</mosaic_0001>

<llo_original>
// kernel: discriminator_forward.1
$region0: #{discriminator_forward.1}
  #allocation0 [shape = 'u32[]', space=smem, size = 0x4, offset = 0x4, fixed_abs, tag = 'smem constant byte address 0x4 - core index']
  #allocation1 [shape = 'u32[144,128]{1,0:T(1,128)}', space=vmem, size = 0x12000, scoped, tag = 'internal scratch']
  %s0 = inlined_call_operand.vmem [shape: f32[8,128], index: 0, kind: input, shape index: {}]
  %s1 = inlined_call_operand.vmem [shape: f32[128,128], index: 1, kind: input, shape index: {}]
  %s2 = inlined_call_operand.vmem [shape: f32[128,128], index: 2, kind: input, shape index: {}]
  %s3 = inlined_call_operand.vmem [shape: f32[1,128], index: 3, kind: input, shape index: {}]
  %s4 = inlined_call_operand.vmem [shape: f32[128,128], index: 4, kind: input, shape index: {}]
  %s5 = inlined_call_operand.vmem [shape: f32[1,128], index: 5, kind: input, shape index: {}]
  %s6 = inlined_call_operand.vmem [shape: f32[128,128], index: 6, kind: input, shape index: {}]
  %s7 = inlined_call_operand.vmem [shape: f32[1,128], index: 7, kind: input, shape index: {}]
  %s8 = inlined_call_operand.hbm [shape: f32[8,128], index: 8, kind: output, shape index: {0}]
  %s9 = inlined_call_operand.vmem [shape: f32[8,128], index: 9, kind: output, shape index: {1}]
  %s10 = inlined_call_operand.vmem [shape: f32[8,128], index: 10, kind: output, shape index: {2}]
  %11 = xla_tuple %s8, %s9, %s10
  %s12 = sld [smem:[#allocation0]]
  $region58: #{discriminator_forward.1} parent=0
    _
  %s14 = ssub.s32 1, %s12
  %s15 = scalar_select 0, %s14, %s12
  $region1: #{discriminator_forward.1} parent=0
    #allocation2 [shape = 'u8[4096]{0}', space=vmem, size = 0x1000, scoped, tag = 'output window, operand 0, single buffered']
    #allocation3 [shape = 's32[1]{0}', space=sflag, size = 0x4, scoped, tag = 'scoped memory for discriminator_forward.1']
    %16 = vsyncpa [#allocation3], 0
    // Predicated region
    $region2: #{discriminator_forward.1} parent=1 // pred_check
      _
    $region3: #{discriminator_forward.1} parent=1 // pred_check_branch
      %18 = sbr.rel (0) target = $region5
    $region4: #{discriminator_forward.1} parent=1 // pred_region
      _
    $region5: #{discriminator_forward.1} parent=1 // pred_fallthru
      _
    // Predicated region
    $region6: #{discriminator_forward.1} parent=1 // pred_check
      _
    $region7: #{discriminator_forward.1} parent=1 // pred_check_branch
      %20 = sbr.rel (0) target = $region9
    $region8: #{discriminator_forward.1} parent=1 // pred_region
      _
    $region9: #{discriminator_forward.1} parent=1 // pred_fallthru
      _
    // Predicated region
    $region10: #{discriminator_forward.1} parent=1 // pred_check
      _
    $region11: #{discriminator_forward.1} parent=1 // pred_check_branch
      %22 = sbr.rel (0) target = $region13
    $region12: #{discriminator_forward.1} parent=1 // pred_region
      _
    $region13: #{discriminator_forward.1} parent=1 // pred_fallthru
      _
    // Predicated region
    $region14: #{discriminator_forward.1} parent=1 // pred_check
      _
    $region15: #{discriminator_forward.1} parent=1 // pred_check_branch
      %24 = sbr.rel (0) target = $region17
    $region16: #{discriminator_forward.1} parent=1 // pred_region
      _
    $region17: #{discriminator_forward.1} parent=1 // pred_fallthru
      _
    // Predicated region
    $region18: #{discriminator_forward.1} parent=1 // pred_check
      _
    $region19: #{discriminator_forward.1} parent=1 // pred_check_branch
      %26 = sbr.rel (0) target = $region21
    $region20: #{discriminator_forward.1} parent=1 // pred_region
      _
    $region21: #{discriminator_forward.1} parent=1 // pred_fallthru
      _
    // Predicated region
    $region22: #{discriminator_forward.1} parent=1 // pred_check
      _
    $region23: #{discriminator_forward.1} parent=1 // pred_check_branch
      %28 = sbr.rel (0) target = $region25
    $region24: #{discriminator_forward.1} parent=1 // pred_region
      _
    $region25: #{discriminator_forward.1} parent=1 // pred_fallthru
      _
    // Predicated region
    $region26: #{discriminator_forward.1} parent=1 // pred_check
      _
    $region27: #{discriminator_forward.1} parent=1 // pred_check_branch
      %30 = sbr.rel (0) target = $region29
    $region28: #{discriminator_forward.1} parent=1 // pred_region
      _
    $region29: #{discriminator_forward.1} parent=1 // pred_fallthru
      _
    // Predicated region
    $region30: #{discriminator_forward.1} parent=1 // pred_check
      _
    $region31: #{discriminator_forward.1} parent=1 // pred_check_branch
      %32 = sbr.rel (0) target = $region33
    $region32: #{discriminator_forward.1} parent=1 // pred_region
      _
    $region33: #{discriminator_forward.1} parent=1 // pred_fallthru
      _
    %v33 = vld [vmem:[%s0] sm:$0xff]
    %v34 = vld [vmem:[%s1] sm:$0xff]
    %v35 = vld [vmem:[%s1 + $0x8] sm:$0xff]
    %v36 = vld [vmem:[%s1 + $0x10] sm:$0xff]
    %v37 = vld [vmem:[%s1 + $0x18] sm:$0xff]
    %v38 = vld [vmem:[%s1 + $0x20] sm:$0xff]
    %v39 = vld [vmem:[%s1 + $0x28] sm:$0xff]
    %v40 = vld [vmem:[%s1 + $0x30] sm:$0xff]
    %v41 = vld [vmem:[%s1 + $0x38] sm:$0xff]
    %v42 = vld [vmem:[%s1 + $0x40] sm:$0xff]
    %v43 = vld [vmem:[%s1 + $0x48] sm:$0xff]
    %v44 = vld [vmem:[%s1 + $0x50] sm:$0xff]
    %v45 = vld [vmem:[%s1 + $0x58] sm:$0xff]
    %v46 = vld [vmem:[%s1 + $0x60] sm:$0xff]
    %v47 = vld [vmem:[%s1 + $0x68] sm:$0xff]
    %v48 = vld [vmem:[%s1 + $0x70] sm:$0xff]
    %v49 = vld [vmem:[%s1 + $0x78] sm:$0xff]
    %50 = vmatprep.subr.mxu0 0.0
    %51 = vmatpush1.msra.mxu0 %v34
    %52 = vmatprep.subr.mxu0 0.0
    %53 = vmatpush1.msra.mxu0 %v35
    %54 = vmatprep.subr.mxu0 0.0
    %55 = vmatpush1.msra.mxu0 %v36
    %56 = vmatprep.subr.mxu0 0.0
    %57 = vmatpush1.msra.mxu0 %v37
    %58 = vmatprep.subr.mxu0 0.0
    %59 = vmatpush1.msra.mxu0 %v38
    %60 = vmatprep.subr.mxu0 0.0
    %61 = vmatpush1.msra.mxu0 %v39
    %62 = vmatprep.subr.mxu0 0.0
    %63 = vmatpush1.msra.mxu0 %v40
    %64 = vmatprep.subr.mxu0 0.0
    %65 = vmatpush1.msra.mxu0 %v41
    %66 = vmatprep.subr.mxu0 0.0
    %67 = vmatpush1.msra.mxu0 %v42
    %68 = vmatprep.subr.mxu0 0.0
    %69 = vmatpush1.msra.mxu0 %v43
    %70 = vmatprep.subr.mxu0 0.0
    %71 = vmatpush1.msra.mxu0 %v44
    %72 = vmatprep.subr.mxu0 0.0
    %73 = vmatpush1.msra.mxu0 %v45
    %74 = vmatprep.subr.mxu0 0.0
    %75 = vmatpush1.msra.mxu0 %v46
    %76 = vmatprep.subr.mxu0 0.0
    %77 = vmatpush1.msra.mxu0 %v47
    %78 = vmatprep.subr.mxu0 0.0
    %79 = vmatpush1.msra.mxu0 %v48
    %80 = vmatprep.subr.mxu0 0.0
    %81 = vmatpush1.msra.mxu0 %v49
    %82 = vmatprep.subr.mxu0 0.0
    %83 = vmatpush1.msra.mxu0 0.0
    %84 = vmatprep.subr.mxu0 0.0
    %85 = vmatpush1.msra.mxu0 0.0
    %86 = vmatprep.subr.mxu0 0.0
    %87 = vmatpush1.msra.mxu0 0.0
    %88 = vmatprep.subr.mxu0 0.0
    %89 = vmatpush1.msra.mxu0 0.0
    %90 = vmatprep.subr.mxu0 0.0
    %91 = vmatpush1.msra.mxu0 0.0
    %92 = vmatprep.subr.mxu0 0.0
    %93 = vmatpush1.msra.mxu0 0.0
    %94 = vmatprep.subr.mxu0 0.0
    %95 = vmatpush1.msra.mxu0 0.0
    %96 = vmatprep.subr.mxu0 0.0
    %97 = vmatpush1.msra.mxu0 0.0
    %98 = vmatprep.subr.mxu0 0.0
    %99 = vmatpush1.msra.mxu0 0.0
    %100 = vmatprep.subr.mxu0 0.0
    %101 = vmatpush1.msra.mxu0 0.0
    %102 = vmatprep.subr.mxu0 0.0
    %103 = vmatpush1.msra.mxu0 0.0
    %104 = vmatprep.subr.mxu0 0.0
    %105 = vmatpush1.msra.mxu0 0.0
    %106 = vmatprep.subr.mxu0 0.0
    %107 = vmatpush1.msra.mxu0 0.0
    %108 = vmatprep.subr.mxu0 0.0
    %109 = vmatpush1.msra.mxu0 0.0
    %110 = vmatprep.subr.mxu0 0.0
    %111 = vmatpush1.msra.mxu0 0.0
    %112 = vmatprep.subr.mxu0 0.0
    %113 = vmatpush1.msra.mxu0 0.0
    %114 = vmatprep.mubr.f32.mxu0 0.0
    %115 = vmatmul.mubr.f32.gmra.mrb[0].mxu0 %v33
    %v116 = vpop.f32.mrb[0].mxu0
    %v117 = vadd.f32 0.0, %v116
    %v118 = vpop.f32.mrb[0].mxu0
    %119 = vdwg.mxu0
    %120 = vadd.xlane.f32.xlu0 %v33
    %v121 = vpop.xlane.xlu0 %120
    %v122 = vmax.f32 %v121, 1.0
    %v123 = vrcp.pop %v122
    %v124 = vmul.f32 %v117, %v123
    %v125 = vld [vmem:[%s2] sm:$0xff]
    %v126 = vld [vmem:[%s2 + $0x8] sm:$0xff]
    %v127 = vld [vmem:[%s2 + $0x10] sm:$0xff]
    %v128 = vld [vmem:[%s2 + $0x18] sm:$0xff]
    %v129 = vld [vmem:[%s2 + $0x20] sm:$0xff]
    %v130 = vld [vmem:[%s2 + $0x28] sm:$0xff]
    %v131 = vld [vmem:[%s2 + $0x30] sm:$0xff]
    %v132 = vld [vmem:[%s2 + $0x38] sm:$0xff]
    %v133 = vld [vmem:[%s2 + $0x40] sm:$0xff]
    %v134 = vld [vmem:[%s2 + $0x48] sm:$0xff]
    %v135 = vld [vmem:[%s2 + $0x50] sm:$0xff]
    %v136 = vld [vmem:[%s2 + $0x58] sm:$0xff]
    %v137 = vld [vmem:[%s2 + $0x60] sm:$0xff]
    %v138 = vld [vmem:[%s2 + $0x68] sm:$0xff]
    %v139 = vld [vmem:[%s2 + $0x70] sm:$0xff]
    %v140 = vld [vmem:[%s2 + $0x78] sm:$0xff]
    %v141 = vld [vmem:[%s3] sm:$0x1]
    %v143 = vlaneseq
    %v144 = vshrl.u32 %v143, 7
    %v145 = vsub.s32 0, %v144
    %v146 = vrot.slane %v141, %v145
    %148 = vmatprep.subr.mxu0 0.0
    %149 = vmatpush1.msra.mxu0 %v125
    %150 = vmatprep.subr.mxu0 0.0
    %151 = vmatpush1.msra.mxu0 %v126
    %152 = vmatprep.subr.mxu0 0.0
    %153 = vmatpush1.msra.mxu0 %v127
    %154 = vmatprep.subr.mxu0 0.0
    %155 = vmatpush1.msra.mxu0 %v128
    %156 = vmatprep.subr.mxu0 0.0
    %157 = vmatpush1.msra.mxu0 %v129
    %158 = vmatprep.subr.mxu0 0.0
    %159 = vmatpush1.msra.mxu0 %v130
    %160 = vmatprep.subr.mxu0 0.0
    %161 = vmatpush1.msra.mxu0 %v131
    %162 = vmatprep.subr.mxu0 0.0
    %163 = vmatpush1.msra.mxu0 %v132
    %164 = vmatprep.subr.mxu0 0.0
    %165 = vmatpush1.msra.mxu0 %v133
    %166 = vmatprep.subr.mxu0 0.0
    %167 = vmatpush1.msra.mxu0 %v134
    %168 = vmatprep.subr.mxu0 0.0
    %169 = vmatpush1.msra.mxu0 %v135
    %170 = vmatprep.subr.mxu0 0.0
    %171 = vmatpush1.msra.mxu0 %v136
    %172 = vmatprep.subr.mxu0 0.0
    %173 = vmatpush1.msra.mxu0 %v137
    %174 = vmatprep.subr.mxu0 0.0
    %175 = vmatpush1.msra.mxu0 %v138
    %176 = vmatprep.subr.mxu0 0.0
    %177 = vmatpush1.msra.mxu0 %v139
    %178 = vmatprep.subr.mxu0 0.0
    %179 = vmatpush1.msra.mxu0 %v140
    %180 = vmatprep.subr.mxu0 0.0
    %181 = vmatpush1.msra.mxu0 0.0
    %182 = vmatprep.subr.mxu0 0.0
    %183 = vmatpush1.msra.mxu0 0.0
    %184 = vmatprep.subr.mxu0 0.0
    %185 = vmatpush1.msra.mxu0 0.0
    %186 = vmatprep.subr.mxu0 0.0
    %187 = vmatpush1.msra.mxu0 0.0
    %188 = vmatprep.subr.mxu0 0.0
    %189 = vmatpush1.msra.mxu0 0.0
    %190 = vmatprep.subr.mxu0 0.0
    %191 = vmatpush1.msra.mxu0 0.0
    %192 = vmatprep.subr.mxu0 0.0
    %193 = vmatpush1.msra.mxu0 0.0
    %194 = vmatprep.subr.mxu0 0.0
    %195 = vmatpush1.msra.mxu0 0.0
    %196 = vmatprep.subr.mxu0 0.0
    %197 = vmatpush1.msra.mxu0 0.0
    %198 = vmatprep.subr.mxu0 0.0
    %199 = vmatpush1.msra.mxu0 0.0
    %200 = vmatprep.subr.mxu0 0.0
    %201 = vmatpush1.msra.mxu0 0.0
    %202 = vmatprep.subr.mxu0 0.0
    %203 = vmatpush1.msra.mxu0 0.0
    %204 = vmatprep.subr.mxu0 0.0
    %205 = vmatpush1.msra.mxu0 0.0
    %206 = vmatprep.subr.mxu0 0.0
    %207 = vmatpush1.msra.mxu0 0.0
    %208 = vmatprep.subr.mxu0 0.0
    %209 = vmatpush1.msra.mxu0 0.0
    %210 = vmatprep.subr.mxu0 0.0
    %211 = vmatpush1.msra.mxu0 0.0
    %212 = vmatprep.mubr.f32.mxu0 0.0
    %213 = vmatmul.mubr.f32.gmra.mrb[0].mxu0 %v124
    %v214 = vpop.f32.mrb[0].mxu0
    %v215 = vadd.f32 %v146, %v214
    %v216 = vpop.f32.mrb[0].mxu0
    %217 = vdwg.mxu0
    %vm218 = vcmp.ge.f32.partialorder %v215, 0.0
    %v219 = vmul.f32 %v215, 0.2
    %v220 = vsel %vm218, %v215, %v219
    %v221 = vld [vmem:[%s4] sm:$0xff]
    %v222 = vld [vmem:[%s4 + $0x8] sm:$0xff]
    %v223 = vld [vmem:[%s4 + $0x10] sm:$0xff]
    %v224 = vld [vmem:[%s4 + $0x18] sm:$0xff]
    %v225 = vld [vmem:[%s4 + $0x20] sm:$0xff]
    %v226 = vld [vmem:[%s4 + $0x28] sm:$0xff]
    %v227 = vld [vmem:[%s4 + $0x30] sm:$0xff]
    %v228 = vld [vmem:[%s4 + $0x38] sm:$0xff]
    %v229 = vld [vmem:[%s4 + $0x40] sm:$0xff]
    %v230 = vld [vmem:[%s4 + $0x48] sm:$0xff]
    %v231 = vld [vmem:[%s4 + $0x50] sm:$0xff]
    %v232 = vld [vmem:[%s4 + $0x58] sm:$0xff]
    %v233 = vld [vmem:[%s4 + $0x60] sm:$0xff]
    %v234 = vld [vmem:[%s4 + $0x68] sm:$0xff]
    %v235 = vld [vmem:[%s4 + $0x70] sm:$0xff]
    %v236 = vld [vmem:[%s4 + $0x78] sm:$0xff]
    %v237 = vld [vmem:[%s5] sm:$0x1]
    %v239 = vlaneseq
    %v240 = vshrl.u32 %v239, 7
    %v241 = vsub.s32 0, %v240
    %v242 = vrot.slane %v237, %v241
    %244 = vmatprep.subr.mxu0 0.0
    %245 = vmatpush1.msra.mxu0 %v221
    %246 = vmatprep.subr.mxu0 0.0
    %247 = vmatpush1.msra.mxu0 %v222
    %248 = vmatprep.subr.mxu0 0.0
    %249 = vmatpush1.msra.mxu0 %v223
    %250 = vmatprep.subr.mxu0 0.0
    %251 = vmatpush1.msra.mxu0 %v224
    %252 = vmatprep.subr.mxu0 0.0
    %253 = vmatpush1.msra.mxu0 %v225
    %254 = vmatprep.subr.mxu0 0.0
    %255 = vmatpush1.msra.mxu0 %v226
    %256 = vmatprep.subr.mxu0 0.0
    %257 = vmatpush1.msra.mxu0 %v227
    %258 = vmatprep.subr.mxu0 0.0
    %259 = vmatpush1.msra.mxu0 %v228
    %260 = vmatprep.subr.mxu0 0.0
    %261 = vmatpush1.msra.mxu0 %v229
    %262 = vmatprep.subr.mxu0 0.0
    %263 = vmatpush1.msra.mxu0 %v230
    %264 = vmatprep.subr.mxu0 0.0
    %265 = vmatpush1.msra.mxu0 %v231
    %266 = vmatprep.subr.mxu0 0.0
    %267 = vmatpush1.msra.mxu0 %v232
    %268 = vmatprep.subr.mxu0 0.0
    %269 = vmatpush1.msra.mxu0 %v233
    %270 = vmatprep.subr.mxu0 0.0
    %271 = vmatpush1.msra.mxu0 %v234
    %272 = vmatprep.subr.mxu0 0.0
    %273 = vmatpush1.msra.mxu0 %v235
    %274 = vmatprep.subr.mxu0 0.0
    %275 = vmatpush1.msra.mxu0 %v236
    %276 = vmatprep.subr.mxu0 0.0
    %277 = vmatpush1.msra.mxu0 0.0
    %278 = vmatprep.subr.mxu0 0.0
    %279 = vmatpush1.msra.mxu0 0.0
    %280 = vmatprep.subr.mxu0 0.0
    %281 = vmatpush1.msra.mxu0 0.0
    %282 = vmatprep.subr.mxu0 0.0
    %283 = vmatpush1.msra.mxu0 0.0
    %284 = vmatprep.subr.mxu0 0.0
    %285 = vmatpush1.msra.mxu0 0.0
    %286 = vmatprep.subr.mxu0 0.0
    %287 = vmatpush1.msra.mxu0 0.0
    %288 = vmatprep.subr.mxu0 0.0
    %289 = vmatpush1.msra.mxu0 0.0
    %290 = vmatprep.subr.mxu0 0.0
    %291 = vmatpush1.msra.mxu0 0.0
    %292 = vmatprep.subr.mxu0 0.0
    %293 = vmatpush1.msra.mxu0 0.0
    %294 = vmatprep.subr.mxu0 0.0
    %295 = vmatpush1.msra.mxu0 0.0
    %296 = vmatprep.subr.mxu0 0.0
    %297 = vmatpush1.msra.mxu0 0.0
    %298 = vmatprep.subr.mxu0 0.0
    %299 = vmatpush1.msra.mxu0 0.0
    %300 = vmatprep.subr.mxu0 0.0
    %301 = vmatpush1.msra.mxu0 0.0
    %302 = vmatprep.subr.mxu0 0.0
    %303 = vmatpush1.msra.mxu0 0.0
    %304 = vmatprep.subr.mxu0 0.0
    %305 = vmatpush1.msra.mxu0 0.0
    %306 = vmatprep.subr.mxu0 0.0
    %307 = vmatpush1.msra.mxu0 0.0
    %308 = vmatprep.mubr.f32.mxu0 0.0
    %309 = vmatmul.mubr.f32.gmra.mrb[0].mxu0 %v220
    %v310 = vpop.f32.mrb[0].mxu0
    %v311 = vadd.f32 %v242, %v310
    %v312 = vpop.f32.mrb[0].mxu0
    %313 = vdwg.mxu0
    %vm314 = vcmp.ge.f32.partialorder %v311, 0.0
    %v315 = vmul.f32 %v311, 0.2
    %v316 = vsel %vm314, %v311, %v315
    %317 = vst [vmem:[#allocation2] sm:$0xff] %v316
    %v318 = vld [vmem:[%s6] sm:$0xff]
    %v319 = vld [vmem:[%s6 + $0x8] sm:$0xff]
    %v320 = vld [vmem:[%s6 + $0x10] sm:$0xff]
    %v321 = vld [vmem:[%s6 + $0x18] sm:$0xff]
    %v322 = vld [vmem:[%s6 + $0x20] sm:$0xff]
    %v323 = vld [vmem:[%s6 + $0x28] sm:$0xff]
    %v324 = vld [vmem:[%s6 + $0x30] sm:$0xff]
    %v325 = vld [vmem:[%s6 + $0x38] sm:$0xff]
    %v326 = vld [vmem:[%s6 + $0x40] sm:$0xff]
    %v327 = vld [vmem:[%s6 + $0x48] sm:$0xff]
    %v328 = vld [vmem:[%s6 + $0x50] sm:$0xff]
    %v329 = vld [vmem:[%s6 + $0x58] sm:$0xff]
    %v330 = vld [vmem:[%s6 + $0x60] sm:$0xff]
    %v331 = vld [vmem:[%s6 + $0x68] sm:$0xff]
    %v332 = vld [vmem:[%s6 + $0x70] sm:$0xff]
    %v333 = vld [vmem:[%s6 + $0x78] sm:$0xff]
    %v334 = vld [vmem:[%s7] sm:$0x1]
    %v336 = vlaneseq
    %v337 = vshrl.u32 %v336, 7
    %v338 = vsub.s32 0, %v337
    %v339 = vrot.slane %v334, %v338
    %341 = vmatprep.subr.mxu0 0.0
    %342 = vmatpush1.msra.mxu0 %v318
    %343 = vmatprep.subr.mxu0 0.0
    %344 = vmatpush1.msra.mxu0 %v319
    %345 = vmatprep.subr.mxu0 0.0
    %346 = vmatpush1.msra.mxu0 %v320
    %347 = vmatprep.subr.mxu0 0.0
    %348 = vmatpush1.msra.mxu0 %v321
    %349 = vmatprep.subr.mxu0 0.0
    %350 = vmatpush1.msra.mxu0 %v322
    %351 = vmatprep.subr.mxu0 0.0
    %352 = vmatpush1.msra.mxu0 %v323
    %353 = vmatprep.subr.mxu0 0.0
    %354 = vmatpush1.msra.mxu0 %v324
    %355 = vmatprep.subr.mxu0 0.0
    %356 = vmatpush1.msra.mxu0 %v325
    %357 = vmatprep.subr.mxu0 0.0
    %358 = vmatpush1.msra.mxu0 %v326
    %359 = vmatprep.subr.mxu0 0.0
    %360 = vmatpush1.msra.mxu0 %v327
    %361 = vmatprep.subr.mxu0 0.0
    %362 = vmatpush1.msra.mxu0 %v328
    %363 = vmatprep.subr.mxu0 0.0
    %364 = vmatpush1.msra.mxu0 %v329
    %365 = vmatprep.subr.mxu0 0.0
    %366 = vmatpush1.msra.mxu0 %v330
    %367 = vmatprep.subr.mxu0 0.0
    %368 = vmatpush1.msra.mxu0 %v331
    %369 = vmatprep.subr.mxu0 0.0
    %370 = vmatpush1.msra.mxu0 %v332
    %371 = vmatprep.subr.mxu0 0.0
    %372 = vmatpush1.msra.mxu0 %v333
    %373 = vmatprep.subr.mxu0 0.0
    %374 = vmatpush1.msra.mxu0 0.0
    %375 = vmatprep.subr.mxu0 0.0
    %376 = vmatpush1.msra.mxu0 0.0
    %377 = vmatprep.subr.mxu0 0.0
    %378 = vmatpush1.msra.mxu0 0.0
    %379 = vmatprep.subr.mxu0 0.0
    %380 = vmatpush1.msra.mxu0 0.0
    %381 = vmatprep.subr.mxu0 0.0
    %382 = vmatpush1.msra.mxu0 0.0
    %383 = vmatprep.subr.mxu0 0.0
    %384 = vmatpush1.msra.mxu0 0.0
    %385 = vmatprep.subr.mxu0 0.0
    %386 = vmatpush1.msra.mxu0 0.0
    %387 = vmatprep.subr.mxu0 0.0
    %388 = vmatpush1.msra.mxu0 0.0
    %389 = vmatprep.subr.mxu0 0.0
    %390 = vmatpush1.msra.mxu0 0.0
    %391 = vmatprep.subr.mxu0 0.0
    %392 = vmatpush1.msra.mxu0 0.0
    %393 = vmatprep.subr.mxu0 0.0
    %394 = vmatpush1.msra.mxu0 0.0
    %395 = vmatprep.subr.mxu0 0.0
    %396 = vmatpush1.msra.mxu0 0.0
    %397 = vmatprep.subr.mxu0 0.0
    %398 = vmatpush1.msra.mxu0 0.0
    %399 = vmatprep.subr.mxu0 0.0
    %400 = vmatpush1.msra.mxu0 0.0
    %401 = vmatprep.subr.mxu0 0.0
    %402 = vmatpush1.msra.mxu0 0.0
    %403 = vmatprep.subr.mxu0 0.0
    %404 = vmatpush1.msra.mxu0 0.0
    %405 = vmatprep.mubr.f32.mxu0 0.0
    %406 = vmatmul.mubr.f32.gmra.mrb[0].mxu0 %v316
    %v407 = vpop.f32.mrb[0].mxu0
    %v408 = vadd.f32 %v339, %v407
    %v409 = vpop.f32.mrb[0].mxu0
    %410 = vdwg.mxu0
    %411 = vst [vmem:[%s9] sm:$0xff] %v408
    %412 = vmax.xlane.f32.xlu0 %v408
    %v413 = vpop.xlane.xlu0 %412
    %v414 = vsub.f32 %v408, %v413
    %v415 = vmul.f32 %v414, 1.442695
    %v416 = vpow.pop %v415
    %417 = vadd.xlane.f32.xlu0 %v416
    %v418 = vpop.xlane.xlu0 %417
    %v419 = vrcp.pop %v418
    %v420 = vmul.f32 %v416, %v419
    %421 = vst [vmem:[%s10] sm:$0xff] %v420
    // Predicated region
    $region34: #{discriminator_forward.1} parent=1 // pred_check
      _
    $region35: #{discriminator_forward.1} parent=1 // pred_check_branch
      %423 = sbr.rel (0) target = $region37
    $region36: #{discriminator_forward.1} parent=1 // pred_region
      %s425 = ssub.s32 128, 128
      %426 = vsyncadd [#allocation3], %s425
      %s428 = sshll.u32 [#allocation2], 4
      %s429 = int_to_ptr.vmem [resolvable:$true] %s428
      %431 = dma.vmem_to_hbm [thread:$0]  %s429, 128, %s8, [#allocation3]
    $region37: #{discriminator_forward.1} parent=1 // pred_fallthru
      _
    // Predicated region
    $region38: #{discriminator_forward.1} parent=1 // pred_check
      _
    $region39: #{discriminator_forward.1} parent=1 // pred_check_branch
      %433 = sbr.rel (0) target = $region41
    $region40: #{discriminator_forward.1} parent=1 // pred_region
      _
    $region41: #{discriminator_forward.1} parent=1 // pred_fallthru
      _
    // Predicated region
    $region42: #{discriminator_forward.1} parent=1 // pred_check
      _
    $region43: #{discriminator_forward.1} parent=1 // pred_check_branch
      %435 = sbr.rel (0) target = $region45
    $region44: #{discriminator_forward.1} parent=1 // pred_region
      _
    $region45: #{discriminator_forward.1} parent=1 // pred_fallthru
      _
    // Predicated region
    $region46: #{discriminator_forward.1} parent=1 // pred_check
      _
    $region47: #{discriminator_forward.1} parent=1 // pred_check_branch
      %437 = sbr.rel (0) target = $region49
    $region48: #{discriminator_forward.1} parent=1 // pred_region
      %438 = dma.done [#allocation3], 128
    $region49: #{discriminator_forward.1} parent=1 // pred_fallthru
      _
    // Predicated region
    $region50: #{discriminator_forward.1} parent=1 // pred_check
      _
    $region51: #{discriminator_forward.1} parent=1 // pred_check_branch
      %440 = sbr.rel (0) target = $region53
    $region52: #{discriminator_forward.1} parent=1 // pred_region
      _
    $region53: #{discriminator_forward.1} parent=1 // pred_fallthru
      _
    // Predicated region
    $region54: #{discriminator_forward.1} parent=1 // pred_check
      _
    $region55: #{discriminator_forward.1} parent=1 // pred_check_branch
      %442 = sbr.rel (0) target = $region57
    $region56: #{discriminator_forward.1} parent=1 // pred_region
      _
    $region57: #{discriminator_forward.1} parent=1 // pred_fallthru
      _
    %443 = vsyncpa [#allocation3], 1

</llo_original>
